<compile_context>
chip_gen: v5e
topology: v5e:2x2
jax: 0.10.0
libtpu: 0.0.40
codegen_flags: <defaults>
</compile_context>

<pallas_src>
import jax
import jax.numpy as jnp
from jax.experimental import pallas as pl
from jax.experimental.pallas import tpu as pltpu

_LANES = 128     # boxes per lane-row
_TR_MAX = 1024   # max rows per grid step (VMEM: ~9 MiB double-buffered)
_EPS = 1e-7      # denominator guard (torchvision parity)


def _giou_loss_kernel(b_ref, out_ref):
    # b_ref: (8, TR, 128) f32 coordinate planes.
    #   planes 0..3 = pred  x1, y1, x2, y2
    #   planes 4..7 = target x1, y1, x2, y2
    px1, py1, px2, py2 = b_ref[0], b_ref[1], b_ref[2], b_ref[3]
    tx1, ty1, tx2, ty2 = b_ref[4], b_ref[5], b_ref[6], b_ref[7]

    # Intersection
    iw = jnp.maximum(jnp.minimum(px2, tx2) - jnp.maximum(px1, tx1), 0.0)
    ih = jnp.maximum(jnp.minimum(py2, ty2) - jnp.maximum(py1, ty1), 0.0)
    inter = iw * ih

    # Areas and union
    area_p = (px2 - px1) * (py2 - py1)
    area_t = (tx2 - tx1) * (ty2 - ty1)
    union = area_p + area_t - inter

    # Smallest enclosing box
    cw = jnp.maximum(px2, tx2) - jnp.minimum(px1, tx1)
    ch = jnp.maximum(py2, ty2) - jnp.minimum(py1, ty1)
    area_c = cw * ch

    # Exact divisions: memory-bound kernel, VALU slack makes these free.
    iou = inter / (union + _EPS)
    giou = iou - (area_c - union) / (area_c + _EPS)
    out_ref[...] = 1.0 - giou  # dense (TR, 128) unmasked store


def _ceil_div(a: int, b: int) -> int:
    return -(-a // b)


def _round_up(a: int, b: int) -> int:
    return _ceil_div(a, b) * b


def _choose_tiling(n: int, max_rows: int) -> tuple[int, int, int]:
    """Return (r_pad, tr, steps) for n boxes with `max_rows` 128-box rows/step."""
    r = _ceil_div(n, _LANES)
    if r <= max_rows:
        # Single step: block == full extent, no sublane-divisibility requirement,
        # no padding rows beyond lane alignment (biggest tile -> best roofline
        # fraction on single-TC v5e/v6e).
        return r, r, 1
    # Multi-step: split rows as evenly as possible (multiple-of-8 blocks keep the
    # (8,128) constraint, padding waste < 8 rows) and use an even step count so
    # v7x's two TensorCores each get a balanced share of the "parallel" axis.
    steps = _ceil_div(r, max_rows)
    steps = _round_up(steps, 2)
    tr = _round_up(_ceil_div(r, steps), 8)
    r_pad = steps * tr
    return r_pad, tr, steps


def _giou_pallas(planes: jnp.ndarray, r_pad: int, tr: int, steps: int) -> jnp.ndarray:
    # planes: (8, r_pad, 128) f32 stacked coordinate-major planes.
    return pl.pallas_call(
        _giou_loss_kernel,
        out_shape=jax.ShapeDtypeStruct((r_pad, _LANES), jnp.float32),
        grid=(steps,),
        in_specs=[pl.BlockSpec((8, tr, _LANES), lambda i: (0, i, 0))],
        out_specs=pl.BlockSpec((tr, _LANES), lambda i: (i, 0)),
        compiler_params=pltpu.CompilerParams(dimension_semantics=("parallel",)),
    )(planes)


def giou_loss_coord_major(boxes_cm: jnp.ndarray,
                          *, max_rows_per_step: int = _TR_MAX) -> jnp.ndarray:
    """Fast path: boxes_cm is (2, 4, N) coordinate-major (pred stacked on target).

    When N is a multiple of 128 (typical fixed proposal counts) this is a
    zero-copy reshape straight into the kernel -- no extra HBM layout pass.
    Returns (N,) loss = 1 - GIoU.
    """
    assert boxes_cm.ndim == 3 and boxes_cm.shape[0] == 2 and boxes_cm.shape[1] == 4
    n = boxes_cm.shape[2]
    r_pad, tr, steps = _choose_tiling(n, max_rows_per_step)
    n_pad = r_pad * _LANES
    b = boxes_cm.astype(jnp.float32)
    if n_pad != n:
        b = jnp.pad(b, ((0, 0), (0, 0), (0, n_pad - n)))
    planes = b.reshape(8, r_pad, _LANES)  # zero-copy when no pad was needed
    out = _giou_pallas(planes, r_pad, tr, steps)
    return out.reshape(-1)[:n]


def giou_loss(pred_boxes: jnp.ndarray, target_boxes: jnp.ndarray,
              *, max_rows_per_step: int = _TR_MAX) -> jnp.ndarray:
    """Compatibility path for (N, 4) xyxy boxes (module interface).

    Does exactly one fused stack+pad+transpose layout pass to build the
    coordinate-major planes; producers that can emit coordinate-major boxes
    should call `giou_loss_coord_major` and skip it. Returns (N,) losses.
    """
    assert pred_boxes.shape == target_boxes.shape and pred_boxes.shape[-1] == 4
    n = pred_boxes.shape[0]
    r_pad, tr, steps = _choose_tiling(n, max_rows_per_step)
    n_pad = r_pad * _LANES

    boxes = jnp.stack([pred_boxes, target_boxes], axis=0).astype(jnp.float32)  # (2, N, 4)
    boxes = jnp.pad(boxes, ((0, 0), (0, n_pad - n), (0, 0)))                   # (2, n_pad, 4)
    planes = boxes.transpose(0, 2, 1).reshape(8, r_pad, _LANES)                # (8, r_pad, 128)

    out = _giou_pallas(planes, r_pad, tr, steps)
    return out.reshape(-1)[:n]


def _giou_loss_ref(pred, target, eps=_EPS):
    px1, py1, px2, py2 = pred[:, 0], pred[:, 1], pred[:, 2], pred[:, 3]
    tx1, ty1, tx2, ty2 = target[:, 0], target[:, 1], target[:, 2], target[:, 3]
    iw = jnp.maximum(jnp.minimum(px2, tx2) - jnp.maximum(px1, tx1), 0.0)
    ih = jnp.maximum(jnp.minimum(py2, ty2) - jnp.maximum(py1, ty1), 0.0)
    inter = iw * ih
    union = (px2 - px1) * (py2 - py1) + (tx2 - tx1) * (ty2 - ty1) - inter
    iou = inter / (union + eps)
    area_c = (jnp.maximum(px2, tx2) - jnp.minimum(px1, tx1)) * (
        jnp.maximum(py2, ty2) - jnp.minimum(py1, ty1)
    )
    return 1.0 - (iou - (area_c - union) / (area_c + eps))


def _make_boxes(kmin, ksz, n):
    # Well-formed xyxy boxes: mins in [0, 32), sizes in [1, 17).
    mins = jax.random.uniform(kmin, (n, 2), minval=0.0, maxval=32.0)
    sizes = jax.random.uniform(ksz, (n, 2), minval=1.0, maxval=17.0)
    return jnp.concatenate([mins, mins + sizes], axis=1).astype(jnp.float32)


if __name__ == "__main__":
    key = jax.random.PRNGKey(0)
    k1, k2, k3, k4 = jax.random.split(key, 4)

    # 1) Small case, single-block path.
    N = 8
    pred = _make_boxes(k1, k2, N)      # (8, 4)
    target = _make_boxes(k3, k4, N)    # (8, 4)
    loss = giou_loss(pred, target)
    jax.block_until_ready(loss)
    ref = _giou_loss_ref(pred, target)
    assert loss.shape == (N,)
    assert jnp.allclose(loss, ref, atol=1e-5, rtol=1e-5), (loss, ref)

    # 2) Multi-step tiled path (small max_rows_per_step forces grid > 1,
    #    exercising the even-split / multiple-of-8 block logic).
    N2 = 2000
    pred2 = _make_boxes(k2, k3, N2)
    target2 = _make_boxes(k4, k1, N2)
    loss2 = giou_loss(pred2, target2, max_rows_per_step=8)
    jax.block_until_ready(loss2)
    ref2 = _giou_loss_ref(pred2, target2)
    assert loss2.shape == (N2,)
    assert jnp.allclose(loss2, ref2, atol=1e-5, rtol=1e-5)

    # 3) Coordinate-major fast path (lane-aligned N -> zero-copy reshape,
    #    no wrapper layout pass). In a real pipeline boxes_cm comes straight
    #    from the producer; here we build it once for the demo.
    N3 = 1024
    pred3 = _make_boxes(k3, k4, N3)
    target3 = _make_boxes(k1, k2, N3)
    boxes_cm = jnp.stack([pred3.T, target3.T], axis=0)   # (2, 4, 1024)
    loss3 = giou_loss_coord_major(boxes_cm)
    jax.block_until_ready(loss3)
    ref3 = _giou_loss_ref(pred3, target3)
    assert loss3.shape == (N3,)
    assert jnp.allclose(loss3, ref3, atol=1e-5, rtol=1e-5)

    print("KERNEL_OK")
</pallas_src>

<mosaic_0001>
module attributes {stable_mosaic.version = 11 : i64} {
  func.func @_giou_loss_kernel(%arg0: i32, %arg1: memref<8x1x128xf32, #tpu.memory_space<vmem>>, %arg2: memref<1x128xf32, #tpu.memory_space<vmem>>) attributes {dimension_semantics = [#tpu.dimension_semantics<parallel>], iteration_bounds = array<i64: 1>, scalar_prefetch = 0 : i64, scratch_operands = 0 : i64, tpu.core_type = #tpu.core_type<tc>, window_params = [{transform_indices = @transform_0, window_bounds = array<i64: 8, 1, 128>}, {transform_indices = @transform_1, window_bounds = array<i64: 1, 128>}]} {
    %c0 = arith.constant 0 : index
    %c0_0 = arith.constant 0 : index
    %c0_1 = arith.constant 0 : index
    %0 = vector.load %arg1[%c0, %c0_0, %c0_1] : memref<8x1x128xf32, #tpu.memory_space<vmem>>, vector<1x1x128xf32>
    %1 = vector.shape_cast %0 : vector<1x1x128xf32> to vector<1x128xf32>
    %c1 = arith.constant 1 : index
    %c0_2 = arith.constant 0 : index
    %c0_3 = arith.constant 0 : index
    %2 = vector.load %arg1[%c1, %c0_2, %c0_3] : memref<8x1x128xf32, #tpu.memory_space<vmem>>, vector<1x1x128xf32>
    %3 = vector.shape_cast %2 : vector<1x1x128xf32> to vector<1x128xf32>
    %c2 = arith.constant 2 : index
    %c0_4 = arith.constant 0 : index
    %c0_5 = arith.constant 0 : index
    %4 = vector.load %arg1[%c2, %c0_4, %c0_5] : memref<8x1x128xf32, #tpu.memory_space<vmem>>, vector<1x1x128xf32>
    %5 = vector.shape_cast %4 : vector<1x1x128xf32> to vector<1x128xf32>
    %c3 = arith.constant 3 : index
    %c0_6 = arith.constant 0 : index
    %c0_7 = arith.constant 0 : index
    %6 = vector.load %arg1[%c3, %c0_6, %c0_7] : memref<8x1x128xf32, #tpu.memory_space<vmem>>, vector<1x1x128xf32>
    %7 = vector.shape_cast %6 : vector<1x1x128xf32> to vector<1x128xf32>
    %c4 = arith.constant 4 : index
    %c0_8 = arith.constant 0 : index
    %c0_9 = arith.constant 0 : index
    %8 = vector.load %arg1[%c4, %c0_8, %c0_9] : memref<8x1x128xf32, #tpu.memory_space<vmem>>, vector<1x1x128xf32>
    %9 = vector.shape_cast %8 : vector<1x1x128xf32> to vector<1x128xf32>
    %c5 = arith.constant 5 : index
    %c0_10 = arith.constant 0 : index
    %c0_11 = arith.constant 0 : index
    %10 = vector.load %arg1[%c5, %c0_10, %c0_11] : memref<8x1x128xf32, #tpu.memory_space<vmem>>, vector<1x1x128xf32>
    %11 = vector.shape_cast %10 : vector<1x1x128xf32> to vector<1x128xf32>
    %c6 = arith.constant 6 : index
    %c0_12 = arith.constant 0 : index
    %c0_13 = arith.constant 0 : index
    %12 = vector.load %arg1[%c6, %c0_12, %c0_13] : memref<8x1x128xf32, #tpu.memory_space<vmem>>, vector<1x1x128xf32>
    %13 = vector.shape_cast %12 : vector<1x1x128xf32> to vector<1x128xf32>
    %c7 = arith.constant 7 : index
    %c0_14 = arith.constant 0 : index
    %c0_15 = arith.constant 0 : index
    %14 = vector.load %arg1[%c7, %c0_14, %c0_15] : memref<8x1x128xf32, #tpu.memory_space<vmem>>, vector<1x1x128xf32>
    %15 = vector.shape_cast %14 : vector<1x1x128xf32> to vector<1x128xf32>
    %16 = arith.minimumf %5, %13 : vector<1x128xf32>
    %17 = arith.maximumf %1, %9 : vector<1x128xf32>
    %18 = arith.subf %16, %17 : vector<1x128xf32>
    %cst = arith.constant 0.000000e+00 : f32
    %19 = vector.broadcast %cst : f32 to vector<1x128xf32>
    %20 = arith.maximumf %18, %19 : vector<1x128xf32>
    %21 = arith.minimumf %7, %15 : vector<1x128xf32>
    %22 = arith.maximumf %3, %11 : vector<1x128xf32>
    %23 = arith.subf %21, %22 : vector<1x128xf32>
    %cst_16 = arith.constant 0.000000e+00 : f32
    %24 = vector.broadcast %cst_16 : f32 to vector<1x128xf32>
    %25 = arith.maximumf %23, %24 : vector<1x128xf32>
    %26 = arith.mulf %20, %25 : vector<1x128xf32>
    %27 = arith.subf %5, %1 : vector<1x128xf32>
    %28 = arith.subf %7, %3 : vector<1x128xf32>
    %29 = arith.mulf %27, %28 : vector<1x128xf32>
    %30 = arith.subf %13, %9 : vector<1x128xf32>
    %31 = arith.subf %15, %11 : vector<1x128xf32>
    %32 = arith.mulf %30, %31 : vector<1x128xf32>
    %33 = arith.addf %29, %32 : vector<1x128xf32>
    %34 = arith.subf %33, %26 : vector<1x128xf32>
    %35 = arith.maximumf %5, %13 : vector<1x128xf32>
    %36 = arith.minimumf %1, %9 : vector<1x128xf32>
    %37 = arith.subf %35, %36 : vector<1x128xf32>
    %38 = arith.maximumf %7, %15 : vector<1x128xf32>
    %39 = arith.minimumf %3, %11 : vector<1x128xf32>
    %40 = arith.subf %38, %39 : vector<1x128xf32>
    %41 = arith.mulf %37, %40 : vector<1x128xf32>
    %cst_17 = arith.constant 1.000000e-07 : f32
    %42 = vector.broadcast %cst_17 : f32 to vector<1x128xf32>
    %43 = arith.addf %34, %42 : vector<1x128xf32>
    %44 = arith.divf %26, %43 : vector<1x128xf32>
    %45 = arith.subf %41, %34 : vector<1x128xf32>
    %cst_18 = arith.constant 1.000000e-07 : f32
    %46 = vector.broadcast %cst_18 : f32 to vector<1x128xf32>
    %47 = arith.addf %41, %46 : vector<1x128xf32>
    %48 = arith.divf %45, %47 : vector<1x128xf32>
    %49 = arith.subf %44, %48 : vector<1x128xf32>
    %cst_19 = arith.constant 1.000000e+00 : f32
    %50 = vector.broadcast %cst_19 : f32 to vector<1x128xf32>
    %51 = arith.subf %50, %49 : vector<1x128xf32>
    %c0_20 = arith.constant 0 : index
    %c0_21 = arith.constant 0 : index
    %52 = vector.load %arg2[%c0_20, %c0_21] : memref<1x128xf32, #tpu.memory_space<vmem>>, vector<1x128xf32>
    tpu.vector_store %arg2[%c0_20, %c0_21], %51 {strides = array<i32>} : memref<1x128xf32, #tpu.memory_space<vmem>>, vector<1x128xf32>,
    return
  }
  func.func @transform_0(%arg0: i32) -> (i32, i32, i32) {
    %c0_i32 = arith.constant 0 : i32
    %c0_i32_0 = arith.constant 0 : i32
    %c0_i32_1 = arith.constant 0 : i32
    return %c0_i32, %arg0, %c0_i32_0 : i32, i32, i32
  }
  func.func @transform_1(%arg0: i32) -> (i32, i32) {
    %c0_i32 = arith.constant 0 : i32
    %c0_i32_0 = arith.constant 0 : i32
    return %arg0, %c0_i32 : i32, i32
  }
}

</mosaic_0001>

<llo_original>
// kernel: tpu_custom_call.1
$region0: #{tpu_custom_call.1}
  #allocation0 [shape = 'u32[]', space=smem, size = 0x4, offset = 0x4, fixed_abs, tag = 'smem constant byte address 0x4 - core index']
  #allocation1 [shape = 'u32[72,128]{1,0:T(1,128)}', space=vmem, size = 0x9000, scoped, tag = 'internal scratch']
  %s0 = inlined_call_operand.hbm [shape: f32[8,1,128], index: 0, kind: input, shape index: {}]
  %s1 = inlined_call_operand.hbm [shape: f32[1,128], index: 1, kind: output, shape index: {}]
  %s2 = sld [smem:[#allocation0]]
  $region18: #{tpu_custom_call.1} parent=0
    _
  %s4 = ssub.s32 1, %s2
  %s5 = scalar_select 0, %s4, %s2
  $region1: #{tpu_custom_call.1} parent=0
    #allocation2 [shape = 'u8[4096]{0}', space=vmem, size = 0x1000, scoped, tag = 'input window, operand 0, single buffered']
    #allocation3 [shape = 's32[1]{0}', space=sflag, size = 0x4, scoped, tag = 'scoped memory for tpu_custom_call.1']
    #allocation4 [shape = 's32[1]{0}', space=sflag, size = 0x4, scoped, tag = 'scoped memory for tpu_custom_call.1']
    #allocation5 [shape = 'u8[512]{0}', space=vmem, size = 0x400, scoped, tag = 'output window, operand 0, single buffered']
    %6 = vsyncpa [#allocation3], 0
    %7 = vsyncpa [#allocation4], 0
    // Predicated region
    $region2: #{tpu_custom_call.1} parent=1 // pred_check
      _
    $region3: #{tpu_custom_call.1} parent=1 // pred_check_branch
      %9 = sbr.rel (0) target = $region5
    $region4: #{tpu_custom_call.1} parent=1 // pred_region
      %11 = vsyncadd [#allocation3], 0
      %s12 = sshll.u32 %s0, 4
      %s13 = int_to_ptr.hbm [resolvable:$true] %s12
      %s14 = sshll.u32 [#allocation2], 4
      %s15 = int_to_ptr.vmem [resolvable:$true] %s14
      %20 = dma.hbm_to_vmem [thread:$0]  %s13, 128, %s15, [#allocation3], 16, 16, 1
    $region5: #{tpu_custom_call.1} parent=1 // pred_fallthru
      _
    // Predicated region
    $region6: #{tpu_custom_call.1} parent=1 // pred_check
      _
    $region7: #{tpu_custom_call.1} parent=1 // pred_check_branch
      %22 = sbr.rel (0) target = $region9
    $region8: #{tpu_custom_call.1} parent=1 // pred_region
      %24 = dma.done [#allocation3], 128
    $region9: #{tpu_custom_call.1} parent=1 // pred_fallthru
      _
    %v25 = vld [vmem:[#allocation2] sm:$0x1]
    %s26 = scalar_lea.vmem [#allocation2], 1
    %v27 = vld [vmem:[%s26] sm:$0x1]
    %s28 = scalar_lea.vmem [#allocation2], 2
    %v29 = vld [vmem:[%s28] sm:$0x1]
    %s30 = scalar_lea.vmem [#allocation2], 3
    %v31 = vld [vmem:[%s30] sm:$0x1]
    %s32 = scalar_lea.vmem [#allocation2], 4
    %v33 = vld [vmem:[%s32] sm:$0x1]
    %s34 = scalar_lea.vmem [#allocation2], 5
    %v35 = vld [vmem:[%s34] sm:$0x1]
    %s36 = scalar_lea.vmem [#allocation2], 6
    %v37 = vld [vmem:[%s36] sm:$0x1]
    %s38 = scalar_lea.vmem [#allocation2], 7
    %v39 = vld [vmem:[%s38] sm:$0x1]
    %v40 = vmin.f32 %v29, %v37
    %v41 = vmax.f32 %v25, %v33
    %v42 = vsub.f32 %v40, %v41
    %v43 = vmax.f32 %v42, 0.0
    %v44 = vmin.f32 %v31, %v39
    %v45 = vmax.f32 %v27, %v35
    %v46 = vsub.f32 %v44, %v45
    %v47 = vmax.f32 %v46, 0.0
    %v48 = vmul.f32 %v43, %v47
    %v49 = vsub.f32 %v29, %v25
    %v50 = vsub.f32 %v31, %v27
    %v51 = vmul.f32 %v49, %v50
    %v52 = vsub.f32 %v37, %v33
    %v53 = vsub.f32 %v39, %v35
    %v54 = vmul.f32 %v52, %v53
    %v55 = vadd.f32 %v51, %v54
    %v56 = vsub.f32 %v55, %v48
    %v57 = vmax.f32 %v29, %v37
    %v58 = vmin.f32 %v25, %v33
    %v59 = vsub.f32 %v57, %v58
    %v60 = vmax.f32 %v31, %v39
    %v61 = vmin.f32 %v27, %v35
    %v62 = vsub.f32 %v60, %v61
    %v63 = vmul.f32 %v59, %v62
    %v64 = vadd.f32 %v56, 1e-07
    %v65 = vrcp.pop %v64
    %v66 = vmul.f32 %v64, %v65
    %v67 = vsub.f32 1.0, %v66
    %v68 = vmul.f32 %v65, %v67
    %v69 = vadd.f32 %v65, %v68
    %vm70 = vweird.f32 %v64
    %vm71 = vweird.f32 %v65
    %vm72 = vmor %vm70, %vm71
    %v73 = vsel %vm72, %v65, %v69
    %v74 = vand.u32 2147483647, %v64
    %vm75 = vcmp.eq.f32.partialorder %v74, 8.507059e+37
    %v76 = vand.u32 %v64, 2147483648
    %v77 = vor.u32 1.1754944e-38, %v76
    %v78 = vsel %vm75, %v77, %v73
    %v79 = vmul.f32 %v48, %v78
    %v80 = vsub.f32 %v63, %v56
    %v81 = vadd.f32 %v63, 1e-07
    %v82 = vrcp.pop %v81
    %v83 = vmul.f32 %v81, %v82
    %v84 = vsub.f32 1.0, %v83
    %v85 = vmul.f32 %v82, %v84
    %v86 = vadd.f32 %v82, %v85
    %vm87 = vweird.f32 %v81
    %vm88 = vweird.f32 %v82
    %vm89 = vmor %vm87, %vm88
    %v90 = vsel %vm89, %v82, %v86
    %v91 = vand.u32 2147483647, %v81
    %vm92 = vcmp.eq.f32.partialorder %v91, 8.507059e+37
    %v93 = vand.u32 %v81, 2147483648
    %v94 = vor.u32 1.1754944e-38, %v93
    %v95 = vsel %vm92, %v94, %v90
    %v96 = vmul.f32 %v80, %v95
    %v97 = vsub.f32 %v79, %v96
    %v98 = vsub.f32 1.0, %v97
    %99 = vst [vmem:[#allocation5] sm:$0x1] %v98
    // Predicated region
    $region10: #{tpu_custom_call.1} parent=1 // pred_check
      _
    $region11: #{tpu_custom_call.1} parent=1 // pred_check_branch
      %101 = sbr.rel (0) target = $region13
    $region12: #{tpu_custom_call.1} parent=1 // pred_region
      %103 = vsyncadd [#allocation4], 0
      %s105 = sshll.u32 [#allocation5], 4
      %s106 = int_to_ptr.vmem [resolvable:$true] %s105
      %s107 = sshll.u32 %s1, 4
      %s108 = int_to_ptr.hbm [resolvable:$true] %s107
      %110 = dma.vmem_to_hbm [thread:$0]  %s106, 16, %s108, [#allocation4]
    $region13: #{tpu_custom_call.1} parent=1 // pred_fallthru
      _
    // Predicated region
    $region14: #{tpu_custom_call.1} parent=1 // pred_check
      _
    $region15: #{tpu_custom_call.1} parent=1 // pred_check_branch
      %112 = sbr.rel (0) target = $region17
    $region16: #{tpu_custom_call.1} parent=1 // pred_region
      %114 = dma.done [#allocation4], 16
    $region17: #{tpu_custom_call.1} parent=1 // pred_fallthru
      _
    %115 = vsyncpa [#allocation3], 1
    %116 = vsyncpa [#allocation4], 1

</llo_original>
